<compile_context>
chip_gen: v5e
topology: v5e:2x2
jax: 0.10.0
libtpu: 0.0.40
codegen_flags: <defaults>
</compile_context>

<pallas_src>
import functools
import math

import jax
import jax.numpy as jnp
from jax.experimental import pallas as pl
from jax.experimental.pallas import tpu as pltpu

# moment slots: sum_x, sum_t, sum_f, sum_x2, sum_t2, sum_xt, sum_xf, s_tl, s_xl
_N_MOMENTS = 9


def _loss_kernel(m_ref, t_ref, f_ref, out_ref, *,
                 chunk_rows, slab_rows, n_slabs, n_valid, has_pad):
    p = pl.program_id(1)          # megacore split of the reduction (usually 1)
    c = pl.program_id(2)          # chunk index within this split
    nc = pl.num_programs(2)

    # Output block is resident across the reduction axis -> use it as the
    # (9, 8, 128) vector-moment accumulator (stored as (1, 1, 72, 128)).
    @pl.when(c == 0)
    def _init():
        out_ref[...] = jnp.zeros_like(out_ref)

    chunk_row0 = (p * nc + c) * chunk_rows      # first global row of this chunk

    def slab_body(s, carry):
        start = pl.multiple_of(s * slab_rows, slab_rows)
        x = m_ref[0, pl.ds(start, slab_rows), :].astype(jnp.float32)
        t = t_ref[0, pl.ds(start, slab_rows), :].astype(jnp.float32)
        f = f_ref[0, pl.ds(start, slab_rows), :].astype(jnp.float32)

        if has_pad:
            # Padded elements are zero in x/t/f (=> contribute 0 to every sum);
            # only the log needs a safe argument, so clamp pads to 1 there.
            row = (chunk_row0 + start
                   + jax.lax.broadcasted_iota(jnp.int32, (slab_rows, 128), 0))
            lane = jax.lax.broadcasted_iota(jnp.int32, (slab_rows, 128), 1)
            valid = (row * 128 + lane) < n_valid
            xs = jnp.where(valid, x, jnp.float32(1.0))
            ts = jnp.where(valid, t, jnp.float32(1.0))
        else:
            xs, ts = x, t

        # Single-log symmetric KL: the reference's 1e-50 epsilons underflow in
        # f32, so a + b == (t/St - x/Sx) * log((t/St)/(x/Sx)); the log(Sx/St)
        # constant cancels after summation since both normalized maps sum to 1.
        l = jnp.log(ts / xs)

        def fold(v):
            # (slab_rows, 128) -> (slab_rows//8, 8, 128) is a tile-aligned
            # no-op reshape; the axis-0 sum is vreg-wise VPU adds (no XLU).
            return jnp.sum(v.reshape(slab_rows // 8, 8, 128), axis=0)

        return (carry[0] + fold(x),
                carry[1] + fold(t),
                carry[2] + fold(f),
                carry[3] + fold(x * x),
                carry[4] + fold(t * t),
                carry[5] + fold(x * t),
                carry[6] + fold(x * f),
                carry[7] + fold(t * l),
                carry[8] + fold(x * l))

    zero = jnp.zeros((8, 128), jnp.float32)
    moms = jax.lax.fori_loop(0, n_slabs, slab_body, (zero,) * _N_MOMENTS)

    # One read-modify-write of the resident output block per chunk.
    for k in range(_N_MOMENTS):
        out_ref[0, 0, pl.ds(k * 8, 8), :] += moms[k]


def loss_pallas(saliency_map, target, fix):
    """Returns (kld, cc, nss) scalars, matching Loss.forward(map, target, fix)."""
    assert saliency_map.shape == target.shape == fix.shape
    B = saliency_map.shape[0]
    N = int(math.prod(saliency_map.shape[1:]))
    if N < 2:
        raise ValueError("Loss requires at least 2 elements per sample (std).")

    # Keep native dtypes through the DMA (bf16 maps / int8 fix are fine);
    # bool is promoted to uint8 for a clean TPU layout.
    if fix.dtype == jnp.bool_:
        fix = fix.astype(jnp.uint8)

    itemsize = max(jnp.dtype(a.dtype).itemsize
                   for a in (saliency_map, target, fix))

    # Lane-dense per-sample layout: rows of 128 lanes.
    rows = -(-N // 128)
    slab_rows = min(64, -(-rows // 8) * 8)          # in-kernel slab (<= 8 KiB/vstream)

    # Chunk rows picked by a byte budget (~2 MiB per input block), not a lane cap.
    target_block_bytes = 2 * 1024 * 1024
    budget_rows = max(slab_rows,
                      (target_block_bytes // (128 * itemsize)) // slab_rows * slab_rows)
    rows_need = -(-rows // slab_rows) * slab_rows
    chunk_rows = int(min(budget_rows, rows_need))

    nc_total = -(-rows_need // chunk_rows)
    # v7x megacore: with batch==1 the batch axis gives no parallelism, so split
    # the reduction into 2 parallel halves (combined in the JAX epilogue).
    P = 2 if (B == 1 and nc_total >= 2) else 1
    nc_total = -(-nc_total // P) * P
    nc_half = nc_total // P
    rows_padded = nc_total * chunk_rows
    n_padded = rows_padded * 128
    has_pad = (n_padded != N)
    n_slabs = chunk_rows // slab_rows

    def prep(a):
        a2 = a.reshape(B, N)
        if has_pad:
            a2 = jnp.pad(a2, ((0, 0), (0, n_padded - N)))
        return a2.reshape(B, rows_padded, 128)

    m3, t3, f3 = prep(saliency_map), prep(target), prep(fix)

    # VMEM budget: double-buffered native-dtype input blocks + slab-local f32
    # temporaries + resident output block, capped for v7x's 64 MiB VMEM.
    blk_in_bytes = chunk_rows * 128 * sum(jnp.dtype(a.dtype).itemsize
                                          for a in (m3, t3, f3))
    vmem_need = (2 * blk_in_bytes
                 + 12 * slab_rows * 128 * 4
                 + 2 * _N_MOMENTS * 8 * 128 * 4
                 + (2 << 20))
    try:
        vmem_cap = int(pltpu.get_tpu_info().vmem_capacity_bytes) // 2 - (2 << 20)
    except Exception:
        vmem_cap = 30 * 1024 * 1024
    vmem_cap = max(8 * 1024 * 1024, min(vmem_cap, 30 * 1024 * 1024))
    vmem_limit = int(max(4 * 1024 * 1024, min(vmem_need, vmem_cap)))

    kernel = functools.partial(
        _loss_kernel,
        chunk_rows=chunk_rows, slab_rows=slab_rows, n_slabs=n_slabs,
        n_valid=N, has_pad=has_pad)

    in_spec = pl.BlockSpec((1, chunk_rows, 128),
                           lambda b, p, c: (b, p * nc_half + c, 0))

    out = pl.pallas_call(
        kernel,
        out_shape=jax.ShapeDtypeStruct((B, P, _N_MOMENTS * 8, 128), jnp.float32),
        grid_spec=pltpu.PrefetchScalarGridSpec(
            num_scalar_prefetch=0,
            grid=(B, P, nc_half),
            in_specs=[in_spec, in_spec, in_spec],
            out_specs=pl.BlockSpec((1, 1, _N_MOMENTS * 8, 128),
                                   lambda b, p, c: (b, p, 0, 0)),
        ),
        compiler_params=pltpu.CompilerParams(
            dimension_semantics=("parallel", "parallel", "arbitrary"),
            vmem_limit_bytes=vmem_limit,
        ),
    )(m3, t3, f3)

    # Tiny JAX epilogue: combine the (P, 8, 128) vector accumulators into 9
    # scalar moments per sample, then derive KLD / CC / NSS algebraically.
    mom = out.reshape(B, P, _N_MOMENTS, 8, 128).sum(axis=(1, 3, 4))   # (B, 9)
    sum_x, sum_t, sum_f = mom[:, 0], mom[:, 1], mom[:, 2]
    sum_x2, sum_t2, sum_xt, sum_xf = mom[:, 3], mom[:, 4], mom[:, 5], mom[:, 6]
    s_tl, s_xl = mom[:, 7], mom[:, 8]

    n = jnp.float32(N)
    xm = sum_x / n
    tm = sum_t / n
    sxx = sum_x2 - sum_x * xm          # sum((x - xm)^2)
    stt = sum_t2 - sum_t * tm          # sum((t - tm)^2)
    sxt = sum_xt - sum_x * tm          # sum((x - xm)(t - tm))

    kld = 0.5 * (s_tl / sum_t - s_xl / sum_x)           # symmetric KL
    cc = sxt / jnp.sqrt(sxx * stt)                       # Pearson CC
    xstd = jnp.sqrt(sxx / (n - 1.0))                     # unbiased std (torch default)
    nss = (sum_xf - xm * sum_f) / (xstd * sum_f)

    return jnp.mean(kld), jnp.mean(cc), jnp.mean(nss)


# ----------------------------- pure-JAX reference -----------------------------
def _loss_ref(m, t, f):
    B = m.shape[0]
    m = m.reshape(B, -1).astype(jnp.float32)
    t = t.reshape(B, -1).astype(jnp.float32)
    f = f.reshape(B, -1).astype(jnp.float32)
    n = m.shape[1]

    def norm(x):
        xm = x.mean()
        xstd = jnp.sqrt(jnp.sum((x - xm) ** 2) / (n - 1))
        return (x - xm) / xstd

    kld = cc = nss = 0.0
    for i in range(B):
        x, y, fi = m[i], t[i], f[i]
        xs, ys = x / x.sum(), y / y.sum()
        a = ys * jnp.log(ys / (xs + 1e-50) + 1e-50)
        b = xs * jnp.log(xs / (ys + 1e-50) + 1e-50)
        kld += (a.sum() + b.sum()) / 2
        xn, yn = norm(x), norm(y)
        num = (xn - xn.mean()) * (yn - yn.mean())
        cc += num.sum() / jnp.sqrt(
            jnp.sum((xn - xn.mean()) ** 2) * jnp.sum((yn - yn.mean()) ** 2))
        nss += (xn * fi).sum() / fi.sum()
    return kld / B, cc / B, nss / B


if __name__ == "__main__":
    key = jax.random.PRNGKey(0)
    k1, k2, k3 = jax.random.split(key, 3)
    B, C, H, W = 2, 4, 16, 16          # N = C*H*W = 1024

    saliency = jax.random.uniform(k1, (B, C, H, W), jnp.float32, 0.01, 1.0)
    target = jax.random.uniform(k2, (B, C, H, W), jnp.float32, 0.01, 1.0)
    fix = (jax.random.uniform(k3, (B, C, H, W), jnp.float32) > 0.9).astype(jnp.float32)

    kld, cc, nss = jax.block_until_ready(loss_pallas(saliency, target, fix))
    kld_r, cc_r, nss_r = _loss_ref(saliency, target, fix)

    assert jnp.allclose(kld, kld_r, rtol=2e-3, atol=5e-4), (kld, kld_r)
    assert jnp.allclose(cc, cc_r, rtol=2e-3, atol=5e-4), (cc, cc_r)
    assert jnp.allclose(nss, nss_r, rtol=2e-3, atol=5e-4), (nss, nss_r)

    print("KERNEL_OK")
</pallas_src>

<mosaic_0001>
module attributes {stable_mosaic.version = 11 : i64} {
  func.func @_loss_kernel(%arg0: i32, %arg1: i32, %arg2: i32, %arg3: memref<1x8x128xf32, #tpu.memory_space<vmem>>, %arg4: memref<1x8x128xf32, #tpu.memory_space<vmem>>, %arg5: memref<1x8x128xf32, #tpu.memory_space<vmem>>, %arg6: memref<1x1x72x128xf32, #tpu.memory_space<vmem>>) attributes {dimension_semantics = [#tpu.dimension_semantics<parallel>, #tpu.dimension_semantics<parallel>, #tpu.dimension_semantics<arbitrary>], iteration_bounds = array<i64: 2, 1, 1>, scalar_prefetch = 0 : i64, scratch_operands = 0 : i64, tpu.core_type = #tpu.core_type<tc>, window_params = [{transform_indices = @transform_0, window_bounds = array<i64: 1, 8, 128>}, {transform_indices = @transform_1, window_bounds = array<i64: 1, 8, 128>}, {transform_indices = @transform_2, window_bounds = array<i64: 1, 8, 128>}, {transform_indices = @transform_3, window_bounds = array<i64: 1, 1, 72, 128>}]} {
    %c0_i32 = arith.constant 0 : i32
    %0 = arith.cmpi eq, %arg2, %c0_i32 : i32
    %1 = arith.extui %0 : i1 to i32
    %c0_i32_0 = arith.constant 0 : i32
    %2 = arith.cmpi ne, %1, %c0_i32_0 : i32
    scf.if %2 {
      %cst_80 = arith.constant 0.000000e+00 : f32
      %104 = vector.broadcast %cst_80 : f32 to vector<1x1x72x128xf32>
      %c0_81 = arith.constant 0 : index
      %c0_82 = arith.constant 0 : index
      %c0_83 = arith.constant 0 : index
      %c0_84 = arith.constant 0 : index
      %105 = vector.load %arg6[%c0_81, %c0_82, %c0_83, %c0_84] : memref<1x1x72x128xf32, #tpu.memory_space<vmem>>, vector<1x1x72x128xf32>
      tpu.vector_store %arg6[%c0_81, %c0_82, %c0_83, %c0_84], %104 {strides = array<i32>} : memref<1x1x72x128xf32, #tpu.memory_space<vmem>>, vector<1x1x72x128xf32>,
    } else {
    }
    %cst = arith.constant 0.000000e+00 : f32
    %3 = vector.broadcast %cst : f32 to vector<8x128xf32>
    %c0_i32_1 = arith.constant 0 : i32
    %c8_i32 = arith.constant 8 : i32
    %4 = arith.muli %c0_i32_1, %c8_i32 : i32
    %5 = tpu.assume_multiple %4, 8 : i32
    %c0 = arith.constant 0 : index
    %6 = arith.index_cast %5 : i32 to index
    %c0_2 = arith.constant 0 : index
    %7 = vector.load %arg3[%c0, %6, %c0_2] : memref<1x8x128xf32, #tpu.memory_space<vmem>>, vector<1x8x128xf32>
    %8 = vector.shape_cast %7 : vector<1x8x128xf32> to vector<8x128xf32>
    %c0_3 = arith.constant 0 : index
    %9 = arith.index_cast %5 : i32 to index
    %c0_4 = arith.constant 0 : index
    %10 = vector.load %arg4[%c0_3, %9, %c0_4] : memref<1x8x128xf32, #tpu.memory_space<vmem>>, vector<1x8x128xf32>
    %11 = vector.shape_cast %10 : vector<1x8x128xf32> to vector<8x128xf32>
    %c0_5 = arith.constant 0 : index
    %12 = arith.index_cast %5 : i32 to index
    %c0_6 = arith.constant 0 : index
    %13 = vector.load %arg5[%c0_5, %12, %c0_6] : memref<1x8x128xf32, #tpu.memory_space<vmem>>, vector<1x8x128xf32>
    %14 = vector.shape_cast %13 : vector<1x8x128xf32> to vector<8x128xf32>
    %15 = arith.divf %11, %8 : vector<8x128xf32>
    %16 = math.log %15 : vector<8x128xf32>
    %17 = vector.shape_cast %8 : vector<8x128xf32> to vector<1x8x128xf32>
    %cst_7 = arith.constant dense<0.000000e+00> : vector<8x128xf32>
    %18 = vector.multi_reduction <add>, %17, %cst_7 [0] : vector<1x8x128xf32> to vector<8x128xf32>
    %19 = arith.addf %3, %18 : vector<8x128xf32>
    %20 = vector.shape_cast %11 : vector<8x128xf32> to vector<1x8x128xf32>
    %cst_8 = arith.constant dense<0.000000e+00> : vector<8x128xf32>
    %21 = vector.multi_reduction <add>, %20, %cst_8 [0] : vector<1x8x128xf32> to vector<8x128xf32>
    %22 = arith.addf %3, %21 : vector<8x128xf32>
    %23 = vector.shape_cast %14 : vector<8x128xf32> to vector<1x8x128xf32>
    %cst_9 = arith.constant dense<0.000000e+00> : vector<8x128xf32>
    %24 = vector.multi_reduction <add>, %23, %cst_9 [0] : vector<1x8x128xf32> to vector<8x128xf32>
    %25 = arith.addf %3, %24 : vector<8x128xf32>
    %26 = arith.mulf %8, %8 : vector<8x128xf32>
    %27 = vector.shape_cast %26 : vector<8x128xf32> to vector<1x8x128xf32>
    %cst_10 = arith.constant dense<0.000000e+00> : vector<8x128xf32>
    %28 = vector.multi_reduction <add>, %27, %cst_10 [0] : vector<1x8x128xf32> to vector<8x128xf32>
    %29 = arith.addf %3, %28 : vector<8x128xf32>
    %30 = arith.mulf %11, %11 : vector<8x128xf32>
    %31 = vector.shape_cast %30 : vector<8x128xf32> to vector<1x8x128xf32>
    %cst_11 = arith.constant dense<0.000000e+00> : vector<8x128xf32>
    %32 = vector.multi_reduction <add>, %31, %cst_11 [0] : vector<1x8x128xf32> to vector<8x128xf32>
    %33 = arith.addf %3, %32 : vector<8x128xf32>
    %34 = arith.mulf %8, %11 : vector<8x128xf32>
    %35 = vector.shape_cast %34 : vector<8x128xf32> to vector<1x8x128xf32>
    %cst_12 = arith.constant dense<0.000000e+00> : vector<8x128xf32>
    %36 = vector.multi_reduction <add>, %35, %cst_12 [0] : vector<1x8x128xf32> to vector<8x128xf32>
    %37 = arith.addf %3, %36 : vector<8x128xf32>
    %38 = arith.mulf %8, %14 : vector<8x128xf32>
    %39 = vector.shape_cast %38 : vector<8x128xf32> to vector<1x8x128xf32>
    %cst_13 = arith.constant dense<0.000000e+00> : vector<8x128xf32>
    %40 = vector.multi_reduction <add>, %39, %cst_13 [0] : vector<1x8x128xf32> to vector<8x128xf32>
    %41 = arith.addf %3, %40 : vector<8x128xf32>
    %42 = arith.mulf %11, %16 : vector<8x128xf32>
    %43 = vector.shape_cast %42 : vector<8x128xf32> to vector<1x8x128xf32>
    %cst_14 = arith.constant dense<0.000000e+00> : vector<8x128xf32>
    %44 = vector.multi_reduction <add>, %43, %cst_14 [0] : vector<1x8x128xf32> to vector<8x128xf32>
    %45 = arith.addf %3, %44 : vector<8x128xf32>
    %46 = arith.mulf %8, %16 : vector<8x128xf32>
    %47 = vector.shape_cast %46 : vector<8x128xf32> to vector<1x8x128xf32>
    %cst_15 = arith.constant dense<0.000000e+00> : vector<8x128xf32>
    %48 = vector.multi_reduction <add>, %47, %cst_15 [0] : vector<1x8x128xf32> to vector<8x128xf32>
    %49 = arith.addf %3, %48 : vector<8x128xf32>
    %c1_i32 = arith.constant 1 : i32
    %c0_16 = arith.constant 0 : index
    %c0_17 = arith.constant 0 : index
    %c0_18 = arith.constant 0 : index
    %c0_19 = arith.constant 0 : index
    %50 = vector.load %arg6[%c0_16, %c0_17, %c0_18, %c0_19] : memref<1x1x72x128xf32, #tpu.memory_space<vmem>>, vector<1x1x8x128xf32>
    %51 = vector.shape_cast %50 : vector<1x1x8x128xf32> to vector<8x128xf32>
    %52 = arith.addf %51, %19 : vector<8x128xf32>
    %c0_20 = arith.constant 0 : index
    %c0_21 = arith.constant 0 : index
    %c0_22 = arith.constant 0 : index
    %c0_23 = arith.constant 0 : index
    %53 = vector.load %arg6[%c0_20, %c0_21, %c0_22, %c0_23] : memref<1x1x72x128xf32, #tpu.memory_space<vmem>>, vector<1x1x8x128xf32>
    %54 = vector.shape_cast %53 : vector<1x1x8x128xf32> to vector<8x128xf32>
    %55 = vector.shape_cast %52 : vector<8x128xf32> to vector<1x1x8x128xf32>
    tpu.vector_store %arg6[%c0_20, %c0_21, %c0_22, %c0_23], %55 {strides = array<i32>} : memref<1x1x72x128xf32, #tpu.memory_space<vmem>>, vector<1x1x8x128xf32>,
    %c0_24 = arith.constant 0 : index
    %c0_25 = arith.constant 0 : index
    %c8 = arith.constant 8 : index
    %c0_26 = arith.constant 0 : index
    %56 = vector.load %arg6[%c0_24, %c0_25, %c8, %c0_26] : memref<1x1x72x128xf32, #tpu.memory_space<vmem>>, vector<1x1x8x128xf32>
    %57 = vector.shape_cast %56 : vector<1x1x8x128xf32> to vector<8x128xf32>
    %58 = arith.addf %57, %22 : vector<8x128xf32>
    %c0_27 = arith.constant 0 : index
    %c0_28 = arith.constant 0 : index
    %c8_29 = arith.constant 8 : index
    %c0_30 = arith.constant 0 : index
    %59 = vector.load %arg6[%c0_27, %c0_28, %c8_29, %c0_30] : memref<1x1x72x128xf32, #tpu.memory_space<vmem>>, vector<1x1x8x128xf32>
    %60 = vector.shape_cast %59 : vector<1x1x8x128xf32> to vector<8x128xf32>
    %61 = vector.shape_cast %58 : vector<8x128xf32> to vector<1x1x8x128xf32>
    tpu.vector_store %arg6[%c0_27, %c0_28, %c8_29, %c0_30], %61 {strides = array<i32>} : memref<1x1x72x128xf32, #tpu.memory_space<vmem>>, vector<1x1x8x128xf32>,
    %c0_31 = arith.constant 0 : index
    %c0_32 = arith.constant 0 : index
    %c16 = arith.constant 16 : index
    %c0_33 = arith.constant 0 : index
    %62 = vector.load %arg6[%c0_31, %c0_32, %c16, %c0_33] : memref<1x1x72x128xf32, #tpu.memory_space<vmem>>, vector<1x1x8x128xf32>
    %63 = vector.shape_cast %62 : vector<1x1x8x128xf32> to vector<8x128xf32>
    %64 = arith.addf %63, %25 : vector<8x128xf32>
    %c0_34 = arith.constant 0 : index
    %c0_35 = arith.constant 0 : index
    %c16_36 = arith.constant 16 : index
    %c0_37 = arith.constant 0 : index
    %65 = vector.load %arg6[%c0_34, %c0_35, %c16_36, %c0_37] : memref<1x1x72x128xf32, #tpu.memory_space<vmem>>, vector<1x1x8x128xf32>
    %66 = vector.shape_cast %65 : vector<1x1x8x128xf32> to vector<8x128xf32>
    %67 = vector.shape_cast %64 : vector<8x128xf32> to vector<1x1x8x128xf32>
    tpu.vector_store %arg6[%c0_34, %c0_35, %c16_36, %c0_37], %67 {strides = array<i32>} : memref<1x1x72x128xf32, #tpu.memory_space<vmem>>, vector<1x1x8x128xf32>,
    %c0_38 = arith.constant 0 : index
    %c0_39 = arith.constant 0 : index
    %c24 = arith.constant 24 : index
    %c0_40 = arith.constant 0 : index
    %68 = vector.load %arg6[%c0_38, %c0_39, %c24, %c0_40] : memref<1x1x72x128xf32, #tpu.memory_space<vmem>>, vector<1x1x8x128xf32>
    %69 = vector.shape_cast %68 : vector<1x1x8x128xf32> to vector<8x128xf32>
    %70 = arith.addf %69, %29 : vector<8x128xf32>
    %c0_41 = arith.constant 0 : index
    %c0_42 = arith.constant 0 : index
    %c24_43 = arith.constant 24 : index
    %c0_44 = arith.constant 0 : index
    %71 = vector.load %arg6[%c0_41, %c0_42, %c24_43, %c0_44] : memref<1x1x72x128xf32, #tpu.memory_space<vmem>>, vector<1x1x8x128xf32>
    %72 = vector.shape_cast %71 : vector<1x1x8x128xf32> to vector<8x128xf32>
    %73 = vector.shape_cast %70 : vector<8x128xf32> to vector<1x1x8x128xf32>
    tpu.vector_store %arg6[%c0_41, %c0_42, %c24_43, %c0_44], %73 {strides = array<i32>} : memref<1x1x72x128xf32, #tpu.memory_space<vmem>>, vector<1x1x8x128xf32>,
    %c0_45 = arith.constant 0 : index
    %c0_46 = arith.constant 0 : index
    %c32 = arith.constant 32 : index
    %c0_47 = arith.constant 0 : index
    %74 = vector.load %arg6[%c0_45, %c0_46, %c32, %c0_47] : memref<1x1x72x128xf32, #tpu.memory_space<vmem>>, vector<1x1x8x128xf32>
    %75 = vector.shape_cast %74 : vector<1x1x8x128xf32> to vector<8x128xf32>
    %76 = arith.addf %75, %33 : vector<8x128xf32>
    %c0_48 = arith.constant 0 : index
    %c0_49 = arith.constant 0 : index
    %c32_50 = arith.constant 32 : index
    %c0_51 = arith.constant 0 : index
    %77 = vector.load %arg6[%c0_48, %c0_49, %c32_50, %c0_51] : memref<1x1x72x128xf32, #tpu.memory_space<vmem>>, vector<1x1x8x128xf32>
    %78 = vector.shape_cast %77 : vector<1x1x8x128xf32> to vector<8x128xf32>
    %79 = vector.shape_cast %76 : vector<8x128xf32> to vector<1x1x8x128xf32>
    tpu.vector_store %arg6[%c0_48, %c0_49, %c32_50, %c0_51], %79 {strides = array<i32>} : memref<1x1x72x128xf32, #tpu.memory_space<vmem>>, vector<1x1x8x128xf32>,
    %c0_52 = arith.constant 0 : index
    %c0_53 = arith.constant 0 : index
    %c40 = arith.constant 40 : index
    %c0_54 = arith.constant 0 : index
    %80 = vector.load %arg6[%c0_52, %c0_53, %c40, %c0_54] : memref<1x1x72x128xf32, #tpu.memory_space<vmem>>, vector<1x1x8x128xf32>
    %81 = vector.shape_cast %80 : vector<1x1x8x128xf32> to vector<8x128xf32>
    %82 = arith.addf %81, %37 : vector<8x128xf32>
    %c0_55 = arith.constant 0 : index
    %c0_56 = arith.constant 0 : index
    %c40_57 = arith.constant 40 : index
    %c0_58 = arith.constant 0 : index
    %83 = vector.load %arg6[%c0_55, %c0_56, %c40_57, %c0_58] : memref<1x1x72x128xf32, #tpu.memory_space<vmem>>, vector<1x1x8x128xf32>
    %84 = vector.shape_cast %83 : vector<1x1x8x128xf32> to vector<8x128xf32>
    %85 = vector.shape_cast %82 : vector<8x128xf32> to vector<1x1x8x128xf32>
    tpu.vector_store %arg6[%c0_55, %c0_56, %c40_57, %c0_58], %85 {strides = array<i32>} : memref<1x1x72x128xf32, #tpu.memory_space<vmem>>, vector<1x1x8x128xf32>,
    %c0_59 = arith.constant 0 : index
    %c0_60 = arith.constant 0 : index
    %c48 = arith.constant 48 : index
    %c0_61 = arith.constant 0 : index
    %86 = vector.load %arg6[%c0_59, %c0_60, %c48, %c0_61] : memref<1x1x72x128xf32, #tpu.memory_space<vmem>>, vector<1x1x8x128xf32>
    %87 = vector.shape_cast %86 : vector<1x1x8x128xf32> to vector<8x128xf32>
    %88 = arith.addf %87, %41 : vector<8x128xf32>
    %c0_62 = arith.constant 0 : index
    %c0_63 = arith.constant 0 : index
    %c48_64 = arith.constant 48 : index
    %c0_65 = arith.constant 0 : index
    %89 = vector.load %arg6[%c0_62, %c0_63, %c48_64, %c0_65] : memref<1x1x72x128xf32, #tpu.memory_space<vmem>>, vector<1x1x8x128xf32>
    %90 = vector.shape_cast %89 : vector<1x1x8x128xf32> to vector<8x128xf32>
    %91 = vector.shape_cast %88 : vector<8x128xf32> to vector<1x1x8x128xf32>
    tpu.vector_store %arg6[%c0_62, %c0_63, %c48_64, %c0_65], %91 {strides = array<i32>} : memref<1x1x72x128xf32, #tpu.memory_space<vmem>>, vector<1x1x8x128xf32>,
    %c0_66 = arith.constant 0 : index
    %c0_67 = arith.constant 0 : index
    %c56 = arith.constant 56 : index
    %c0_68 = arith.constant 0 : index
    %92 = vector.load %arg6[%c0_66, %c0_67, %c56, %c0_68] : memref<1x1x72x128xf32, #tpu.memory_space<vmem>>, vector<1x1x8x128xf32>
    %93 = vector.shape_cast %92 : vector<1x1x8x128xf32> to vector<8x128xf32>
    %94 = arith.addf %93, %45 : vector<8x128xf32>
    %c0_69 = arith.constant 0 : index
    %c0_70 = arith.constant 0 : index
    %c56_71 = arith.constant 56 : index
    %c0_72 = arith.constant 0 : index
    %95 = vector.load %arg6[%c0_69, %c0_70, %c56_71, %c0_72] : memref<1x1x72x128xf32, #tpu.memory_space<vmem>>, vector<1x1x8x128xf32>
    %96 = vector.shape_cast %95 : vector<1x1x8x128xf32> to vector<8x128xf32>
    %97 = vector.shape_cast %94 : vector<8x128xf32> to vector<1x1x8x128xf32>
    tpu.vector_store %arg6[%c0_69, %c0_70, %c56_71, %c0_72], %97 {strides = array<i32>} : memref<1x1x72x128xf32, #tpu.memory_space<vmem>>, vector<1x1x8x128xf32>,
    %c0_73 = arith.constant 0 : index
    %c0_74 = arith.constant 0 : index
    %c64 = arith.constant 64 : index
    %c0_75 = arith.constant 0 : index
    %98 = vector.load %arg6[%c0_73, %c0_74, %c64, %c0_75] : memref<1x1x72x128xf32, #tpu.memory_space<vmem>>, vector<1x1x8x128xf32>
    %99 = vector.shape_cast %98 : vector<1x1x8x128xf32> to vector<8x128xf32>
    %100 = arith.addf %99, %49 : vector<8x128xf32>
    %c0_76 = arith.constant 0 : index
    %c0_77 = arith.constant 0 : index
    %c64_78 = arith.constant 64 : index
    %c0_79 = arith.constant 0 : index
    %101 = vector.load %arg6[%c0_76, %c0_77, %c64_78, %c0_79] : memref<1x1x72x128xf32, #tpu.memory_space<vmem>>, vector<1x1x8x128xf32>
    %102 = vector.shape_cast %101 : vector<1x1x8x128xf32> to vector<8x128xf32>
    %103 = vector.shape_cast %100 : vector<8x128xf32> to vector<1x1x8x128xf32>
    tpu.vector_store %arg6[%c0_76, %c0_77, %c64_78, %c0_79], %103 {strides = array<i32>} : memref<1x1x72x128xf32, #tpu.memory_space<vmem>>, vector<1x1x8x128xf32>,
    return
  }
  func.func @transform_0(%arg0: i32, %arg1: i32, %arg2: i32) -> (i32, i32, i32) {
    %c1_i32 = arith.constant 1 : i32
    %0 = arith.muli %arg1, %c1_i32 : i32
    %1 = arith.addi %0, %arg2 : i32
    %c0_i32 = arith.constant 0 : i32
    %c0_i32_0 = arith.constant 0 : i32
    return %arg0, %1, %c0_i32 : i32, i32, i32
  }
  func.func @transform_1(%arg0: i32, %arg1: i32, %arg2: i32) -> (i32, i32, i32) {
    %c1_i32 = arith.constant 1 : i32
    %0 = arith.muli %arg1, %c1_i32 : i32
    %1 = arith.addi %0, %arg2 : i32
    %c0_i32 = arith.constant 0 : i32
    %c0_i32_0 = arith.constant 0 : i32
    return %arg0, %1, %c0_i32 : i32, i32, i32
  }
  func.func @transform_2(%arg0: i32, %arg1: i32, %arg2: i32) -> (i32, i32, i32) {
    %c1_i32 = arith.constant 1 : i32
    %0 = arith.muli %arg1, %c1_i32 : i32
    %1 = arith.addi %0, %arg2 : i32
    %c0_i32 = arith.constant 0 : i32
    %c0_i32_0 = arith.constant 0 : i32
    return %arg0, %1, %c0_i32 : i32, i32, i32
  }
  func.func @transform_3(%arg0: i32, %arg1: i32, %arg2: i32) -> (i32, i32, i32, i32) {
    %c0_i32 = arith.constant 0 : i32
    %c0_i32_0 = arith.constant 0 : i32
    %c0_i32_1 = arith.constant 0 : i32
    return %arg0, %arg1, %c0_i32, %c0_i32_0 : i32, i32, i32, i32
  }
}

</mosaic_0001>

<llo_original>
// kernel: tpu_custom_call.1
$region0: #{tpu_custom_call.1}
  #allocation0 [shape = 'u32[]', space=smem, size = 0x4, offset = 0x4, fixed_abs, tag = 'smem constant byte address 0x4 - core index']
  #allocation1 [shape = 'u32[72,128]{1,0:T(1,128)}', space=vmem, size = 0x9000, scoped, tag = 'internal scratch']
  %s0 = inlined_call_operand.hbm [shape: f32[2,8,128], index: 0, kind: input, shape index: {}]
  %s1 = inlined_call_operand.hbm [shape: f32[2,8,128], index: 1, kind: input, shape index: {}]
  %s2 = inlined_call_operand.hbm [shape: f32[2,8,128], index: 2, kind: input, shape index: {}]
  %s3 = inlined_call_operand.hbm [shape: f32[2,1,72,128], index: 3, kind: output, shape index: {}]
  %s4 = sld [smem:[#allocation0]]
  $region61: #{tpu_custom_call.1} parent=0
    _
  %s6 = ssub.s32 1, %s4
  %s7 = scalar_select 0, %s6, %s4
  $region1: #{tpu_custom_call.1} parent=0
    #allocation2 [shape = 'u8[8192]{0}', space=vmem, size = 0x2000, scoped, tag = 'input window, operand 0']
    #allocation3 [shape = 's32[2]{0}', space=sflag, size = 0x8, scoped, tag = 'scoped memory for tpu_custom_call.1']
    #allocation4 [shape = 's32[2]{0}', space=sflag, size = 0x8, scoped, tag = 'scoped memory for tpu_custom_call.1']
    #allocation5 [shape = 'u8[8192]{0}', space=vmem, size = 0x2000, scoped, tag = 'input window, operand 1']
    #allocation6 [shape = 's32[2]{0}', space=sflag, size = 0x8, scoped, tag = 'scoped memory for tpu_custom_call.1']
    #allocation7 [shape = 'u8[8192]{0}', space=vmem, size = 0x2000, scoped, tag = 'input window, operand 2']
    #allocation8 [shape = 'u8[73728]{0}', space=vmem, size = 0x12000, scoped, tag = 'output window, operand 0']
    %8 = vsyncpa [#allocation3], 0
    %s9 = scalar_lea.sflag [#allocation3], 1
    %10 = vsyncpa %s9, 0
    %11 = vsyncpa [#allocation6], 0
    %s12 = scalar_lea.sflag [#allocation6], 1
    %13 = vsyncpa %s12, 0
    %14 = vsyncpa [#allocation4], 0
    %s15 = scalar_lea.sflag [#allocation4], 1
    %16 = vsyncpa %s15, 0
    loop: start=0, step=1, limit=4
    $region2: #{tpu_custom_call.1} parent=1 // loop_pre_header
      _
    $region3: #{tpu_custom_call.1} parent=1 // loop_header
      %s18 = sphi 0, %s22
      %p19 = scmp.ge.s32.totalorder %s18, 4
      %s25 = sphi 0, %s44
      %s26 = sphi 0, %s40
      %s27 = sphi 0, %s36
      %s28 = sphi 0, %s25
      %s29 = sphi 0, %s26
      %s30 = sphi 0, %s27
      %s31 = sphi 0, %s28
      %s32 = sphi 0, %s29
      %s33 = sphi 0, %s30
      %s51 = sphi 0, %s53
      %s54 = sphi 0, %s51
      %s55 = sphi 0, %s54
      %s71 = sphi 0, %s55
      %s81 = sphi 0, %s83
      %s84 = sphi 0, %s81
      %s85 = sphi 0, %s84
      %s101 = sphi 0, %s85
      %s111 = sphi 0, %s113
      %s114 = sphi 0, %s111
      %s115 = sphi 0, %s114
      %s131 = sphi 0, %s115
      %s139 = sphi 0, %s141
      %s142 = sphi 0, %s139
      %s143 = sphi 0, %s142
      %s159 = sphi 0, %s143
    $region4: #{tpu_custom_call.1} parent=1 // loop_header_branch
      %21 = sbr.rel (%p19) target = $region8
    $region5: #{tpu_custom_call.1} parent=1 // loop_body
      %s23 = ssub.s32 %s18, 1
      %s24 = ssub.s32 %s18, 2
      %s34 = sadd.s32 1, %s27
      %p35 = scmp.ge.s32.totalorder %s34, 1
      %s36 = scalar_select %p35, 0, %s34
      %s37 = sadd.s32 1, %s26
      %s38 = scalar_select %p35, %s37, %s26
      %p39 = scmp.ge.s32.totalorder %s38, 1
      %s40 = scalar_select %p39, 0, %s38
      %s41 = sadd.s32 1, %s25
      %s42 = scalar_select %p39, %s41, %s25
      %p43 = scmp.ge.s32.totalorder %s42, 2
      %s44 = scalar_select %p43, 0, %s42
      %s45 = sadd.s32 %s26, %s27
      %s46 = sadd.s32 %s40, %s36
      %s47 = ssub.s32 %s25, %s44
      %s48 = ssub.s32 %s45, %s46
      %s49 = sor.u32 %s47, %s48
      %p50 = scmp.eq.s32.totalorder %s49, 0
      %s52 = sadd.s32 %s51, 1
      %s53 = scalar_select %p50, %s51, %s52
      %p56 = pneg %p50
      %p57 = scmp.eq.s32.totalorder %s18, 1
      %p58 = por %p56, %p57
      %p59 = scmp.ne.s32.totalorder %s51, %s54
      %p60 = scmp.eq.s32.totalorder %s18, 0
      %p61 = por %p59, %p60
      %p62 = scmp.ne.s32.totalorder %s51, %s54
      %p63 = scmp.eq.s32.totalorder %s23, 1
      %p64 = por %p62, %p63
      %p65 = scmp.ne.s32.totalorder %s54, %s55
      %p66 = scmp.eq.s32.totalorder %s23, 0
      %p67 = por %p65, %p66
      %p68 = scmp.ne.s32.totalorder %s54, %s55
      %p69 = scmp.eq.s32.totalorder %s24, 1
      %p70 = por %p68, %p69
      %p72 = scmp.ne.s32.totalorder %s55, %s71
      %p73 = scmp.eq.s32.totalorder %s24, 0
      %p74 = por %p72, %p73
      %s75 = sadd.s32 %s26, %s27
      %s76 = sadd.s32 %s40, %s36
      %s77 = ssub.s32 %s25, %s44
      %s78 = ssub.s32 %s75, %s76
      %s79 = sor.u32 %s77, %s78
      %p80 = scmp.eq.s32.totalorder %s79, 0
      %s82 = sadd.s32 %s81, 1
      %s83 = scalar_select %p80, %s81, %s82
      %p86 = pneg %p80
      %p87 = scmp.eq.s32.totalorder %s18, 1
      %p88 = por %p86, %p87
      %p89 = scmp.ne.s32.totalorder %s81, %s84
      %p90 = scmp.eq.s32.totalorder %s18, 0
      %p91 = por %p89, %p90
      %p92 = scmp.ne.s32.totalorder %s81, %s84
      %p93 = scmp.eq.s32.totalorder %s23, 1
      %p94 = por %p92, %p93
      %p95 = scmp.ne.s32.totalorder %s84, %s85
      %p96 = scmp.eq.s32.totalorder %s23, 0
      %p97 = por %p95, %p96
      %p98 = scmp.ne.s32.totalorder %s84, %s85
      %p99 = scmp.eq.s32.totalorder %s24, 1
      %p100 = por %p98, %p99
      %p102 = scmp.ne.s32.totalorder %s85, %s101
      %p103 = scmp.eq.s32.totalorder %s24, 0
      %p104 = por %p102, %p103
      %s105 = sadd.s32 %s26, %s27
      %s106 = sadd.s32 %s40, %s36
      %s107 = ssub.s32 %s25, %s44
      %s108 = ssub.s32 %s105, %s106
      %s109 = sor.u32 %s107, %s108
      %p110 = scmp.eq.s32.totalorder %s109, 0
      %s112 = sadd.s32 %s111, 1
      %s113 = scalar_select %p110, %s111, %s112
      %p116 = pneg %p110
      %p117 = scmp.eq.s32.totalorder %s18, 1
      %p118 = por %p116, %p117
      %p119 = scmp.ne.s32.totalorder %s111, %s114
      %p120 = scmp.eq.s32.totalorder %s18, 0
      %p121 = por %p119, %p120
      %p122 = scmp.ne.s32.totalorder %s111, %s114
      %p123 = scmp.eq.s32.totalorder %s23, 1
      %p124 = por %p122, %p123
      %p125 = scmp.ne.s32.totalorder %s114, %s115
      %p126 = scmp.eq.s32.totalorder %s23, 0
      %p127 = por %p125, %p126
      %p128 = scmp.ne.s32.totalorder %s114, %s115
      %p129 = scmp.eq.s32.totalorder %s24, 1
      %p130 = por %p128, %p129
      %p132 = scmp.ne.s32.totalorder %s115, %s131
      %p133 = scmp.eq.s32.totalorder %s24, 0
      %p134 = por %p132, %p133
      %s135 = ssub.s32 %s25, %s44
      %s136 = ssub.s32 %s26, %s40
      %s137 = sor.u32 %s135, %s136
      %p138 = scmp.eq.s32.totalorder %s137, 0
      %s140 = sadd.s32 %s139, 1
      %s141 = scalar_select %p138, %s139, %s140
      %p144 = pneg %p138
      %p145 = scmp.eq.s32.totalorder %s18, 1
      %p146 = por %p144, %p145
      %p147 = scmp.ne.s32.totalorder %s139, %s142
      %p148 = scmp.eq.s32.totalorder %s18, 0
      %p149 = por %p147, %p148
      %p150 = scmp.ne.s32.totalorder %s139, %s142
      %p151 = scmp.eq.s32.totalorder %s23, 1
      %p152 = por %p150, %p151
      %p153 = scmp.ne.s32.totalorder %s142, %s143
      %p154 = scmp.eq.s32.totalorder %s23, 0
      %p155 = por %p153, %p154
      %p156 = scmp.ne.s32.totalorder %s142, %s143
      %p157 = scmp.eq.s32.totalorder %s24, 1
      %p158 = por %p156, %p157
      %p160 = scmp.ne.s32.totalorder %s143, %s159
      %p161 = scmp.eq.s32.totalorder %s24, 0
      %p162 = por %p160, %p161
      %p163 = scmp.le.s32.totalorder 1, %s18
      %p164 = scmp.lt.s32.totalorder %s18, 3
      %p165 = pnand %p163, %p164
      %p166 = pneg %p165
      // Predicated region
      $region9: #{tpu_custom_call.1} parent=5 // pred_check
        _
      $region10: #{tpu_custom_call.1} parent=5 // pred_check_branch
        %168 = sbr.rel (%p165) target = $region12
      $region11: #{tpu_custom_call.1} parent=5 // pred_region
        %s169 = ssub.s32 %s18, 1
      $region12: #{tpu_custom_call.1} parent=5 // pred_fallthru
        _
      %p170 = scmp.lt.s32.totalorder %s18, 2
      // Predicated region
      $region13: #{tpu_custom_call.1} parent=5 // pred_check
        %p171 = pneg %p170
      $region14: #{tpu_custom_call.1} parent=5 // pred_check_branch
        %173 = sbr.rel (%p171) target = $region16
      $region15: #{tpu_custom_call.1} parent=5 // pred_region
        // Predicated region
        $region17: #{tpu_custom_call.1} parent=15 // pred_check
          %p174 = pneg %p61
        $region18: #{tpu_custom_call.1} parent=15 // pred_check_branch
          %176 = sbr.rel (%p174) target = $region20
        $region19: #{tpu_custom_call.1} parent=15 // pred_region
          %s177 = sand.u32 %s51, 1
          %s178 = scalar_lea.sflag [#allocation3], %s177
          %s179 = sand.u32 %s51, 1
          %s180 = smul.addr %s179, 8
          %s181 = scalar_lea.vmem [#allocation2], %s180
          %s182 = sadd.s32 %s26, %s27
          %184 = vsyncadd %s178, 0
          %s185 = sadd.s32 %s182, %s25
          %s186 = smul.addr %s185, 8
          %s187 = scalar_lea.hbm %s0, %s186
          %s189 = sshll.u32 %s187, 4
          %s190 = int_to_ptr.hbm [resolvable:$true] %s189
          %s191 = sshll.u32 %s181, 4
          %s192 = int_to_ptr.vmem [resolvable:$true] %s191
          %194 = dma.hbm_to_vmem [thread:$0]  %s190, 128, %s192, %s178
        $region20: #{tpu_custom_call.1} parent=15 // pred_fallthru
          _
        // Predicated region
        $region21: #{tpu_custom_call.1} parent=15 // pred_check
          %p195 = pneg %p91
        $region22: #{tpu_custom_call.1} parent=15 // pred_check_branch
          %197 = sbr.rel (%p195) target = $region24
        $region23: #{tpu_custom_call.1} parent=15 // pred_region
          %s198 = sand.u32 %s18, 1
          %s199 = scalar_lea.sflag [#allocation6], %s198
          %s200 = sand.u32 %s81, 1
          %s201 = smul.addr %s200, 8
          %s202 = scalar_lea.vmem [#allocation5], %s201
          %s203 = sadd.s32 %s26, %s27
          %205 = vsyncadd %s199, 0
          %s206 = sadd.s32 %s203, %s25
          %s207 = smul.addr %s206, 8
          %s208 = scalar_lea.hbm %s1, %s207
          %s210 = sshll.u32 %s208, 4
          %s211 = int_to_ptr.hbm [resolvable:$true] %s210
          %s212 = sshll.u32 %s202, 4
          %s213 = int_to_ptr.vmem [resolvable:$true] %s212
          %215 = dma.hbm_to_vmem [thread:$0]  %s211, 128, %s213, %s199
        $region24: #{tpu_custom_call.1} parent=15 // pred_fallthru
          _
        // Predicated region
        $region25: #{tpu_custom_call.1} parent=15 // pred_check
          %p216 = pneg %p121
        $region26: #{tpu_custom_call.1} parent=15 // pred_check_branch
          %218 = sbr.rel (%p216) target = $region28
        $region27: #{tpu_custom_call.1} parent=15 // pred_region
          %s219 = sand.u32 %s18, 1
          %s220 = scalar_lea.sflag [#allocation6], %s219
          %s221 = sand.u32 %s111, 1
          %s222 = smul.addr %s221, 8
          %s223 = scalar_lea.vmem [#allocation7], %s222
          %s224 = sadd.s32 %s26, %s27
          %226 = vsyncadd %s220, 0
          %s227 = sadd.s32 %s224, %s25
          %s228 = smul.addr %s227, 8
          %s229 = scalar_lea.hbm %s2, %s228
          %s231 = sshll.u32 %s229, 4
          %s232 = int_to_ptr.hbm [resolvable:$true] %s231
          %s233 = sshll.u32 %s223, 4
          %s234 = int_to_ptr.vmem [resolvable:$true] %s233
          %236 = dma.hbm_to_vmem [thread:$0]  %s232, 128, %s234, %s220
        $region28: #{tpu_custom_call.1} parent=15 // pred_fallthru
          _
      $region16: #{tpu_custom_call.1} parent=5 // pred_fallthru
        _
      %p237 = scmp.le.s32.totalorder 1, %s18
      %p238 = scmp.lt.s32.totalorder %s18, 3
      %p239 = pnand %p237, %p238
      %p240 = pneg %p239
      // Predicated region
      $region29: #{tpu_custom_call.1} parent=5 // pred_check
        _
      $region30: #{tpu_custom_call.1} parent=5 // pred_check_branch
        %242 = sbr.rel (%p239) target = $region32
      $region31: #{tpu_custom_call.1} parent=5 // pred_region
        %s243 = ssub.s32 %s18, 1
        %s244 = sand.u32 %s54, 1
        %s245 = scalar_lea.sflag [#allocation3], %s244
        %s246 = sand.u32 %s54, 1
        %s247 = smul.addr %s246, 8
        %s248 = scalar_lea.vmem [#allocation2], %s247
        // Predicated region
        $region33: #{tpu_custom_call.1} parent=31 // pred_check
          %p249 = pneg %p67
        $region34: #{tpu_custom_call.1} parent=31 // pred_check_branch
          %251 = sbr.rel (%p249) target = $region36
        $region35: #{tpu_custom_call.1} parent=31 // pred_region
          %253 = dma.done %s245, 128
        $region36: #{tpu_custom_call.1} parent=31 // pred_fallthru
          _
        %s254 = sand.u32 %s23, 1
        %s255 = scalar_lea.sflag [#allocation6], %s254
        %s256 = sand.u32 %s84, 1
        %s257 = smul.addr %s256, 8
        %s258 = scalar_lea.vmem [#allocation5], %s257
        // Predicated region
        $region37: #{tpu_custom_call.1} parent=31 // pred_check
          %p259 = pneg %p97
        $region38: #{tpu_custom_call.1} parent=31 // pred_check_branch
          %261 = sbr.rel (%p259) target = $region40
        $region39: #{tpu_custom_call.1} parent=31 // pred_region
          %263 = dma.done %s255, 128
        $region40: #{tpu_custom_call.1} parent=31 // pred_fallthru
          _
        %s264 = sand.u32 %s23, 1
        %s265 = scalar_lea.sflag [#allocation6], %s264
        %s266 = sand.u32 %s114, 1
        %s267 = smul.addr %s266, 8
        %s268 = scalar_lea.vmem [#allocation7], %s267
        // Predicated region
        $region41: #{tpu_custom_call.1} parent=31 // pred_check
          %p269 = pneg %p127
        $region42: #{tpu_custom_call.1} parent=31 // pred_check_branch
          %271 = sbr.rel (%p269) target = $region44
        $region43: #{tpu_custom_call.1} parent=31 // pred_region
          %273 = dma.done %s265, 128
        $region44: #{tpu_custom_call.1} parent=31 // pred_fallthru
          _
        %s274 = sand.u32 %s54, 1
        %s275 = scalar_lea.sflag [#allocation3], %s274
        %s276 = sand.u32 %s54, 1
        %s277 = smul.addr %s276, 8
        %s278 = scalar_lea.vmem [#allocation2], %s277
        %p279 = pneg %p67
        %p280 = pneg %p64
        %s281 = sand.u32 %s23, 1
        %s282 = scalar_lea.sflag [#allocation6], %s281
        %s283 = sand.u32 %s84, 1
        %s284 = smul.addr %s283, 8
        %s285 = scalar_lea.vmem [#allocation5], %s284
        %p286 = pneg %p97
        %p287 = pneg %p94
        %s288 = sand.u32 %s23, 1
        %s289 = scalar_lea.sflag [#allocation6], %s288
        %s290 = sand.u32 %s114, 1
        %s291 = smul.addr %s290, 8
        %s292 = scalar_lea.vmem [#allocation7], %s291
        %p293 = pneg %p127
        %p294 = pneg %p124
        %p295 = pneg %p155
        %p296 = pneg %p152
        %s297 = sand.u32 %s142, 1
        %s298 = scalar_lea.sflag [#allocation4], %s297
        %s299 = sand.u32 %s142, 1
        %s300 = smul.addr %s299, 72
        %s301 = scalar_lea.vmem [#allocation8], %s300
        %s302 = sadd.s32 %s29, %s30
        %s303 = sadd.s32 %s29, %s30
        %s304 = sadd.s32 %s29, %s30
        %p305 = scmp.eq.s32.totalorder %s30, 0
        // Predicated region
        $region45: #{tpu_custom_call.1} parent=31 // pred_check
          %p306 = pneg %p305
        $region46: #{tpu_custom_call.1} parent=31 // pred_check_branch
          %308 = sbr.rel (%p306) target = $region48
        $region47: #{tpu_custom_call.1} parent=31 // pred_region
          %309 = vst [vmem:[%s301] sm:$0xff] 0.0
          %310 = vst [vmem:[%s301 + $0x8] sm:$0xff] 0.0
          %311 = vst [vmem:[%s301 + $0x10] sm:$0xff] 0.0
          %312 = vst [vmem:[%s301 + $0x18] sm:$0xff] 0.0
          %313 = vst [vmem:[%s301 + $0x20] sm:$0xff] 0.0
          %314 = vst [vmem:[%s301 + $0x28] sm:$0xff] 0.0
          %315 = vst [vmem:[%s301 + $0x30] sm:$0xff] 0.0
          %316 = vst [vmem:[%s301 + $0x38] sm:$0xff] 0.0
          %317 = vst [vmem:[%s301 + $0x40] sm:$0xff] 0.0
        $region48: #{tpu_custom_call.1} parent=31 // pred_fallthru
          _
        %v318 = vld [vmem:[%s248] sm:$0xff]
        %v319 = vld [vmem:[%s258] sm:$0xff]
        %v320 = vld [vmem:[%s268] sm:$0xff]
        %v321 = vrcp.pop %v318
        %v322 = vmul.f32 %v318, %v321
        %v323 = vsub.f32 1.0, %v322
        %v324 = vmul.f32 %v321, %v323
        %v325 = vadd.f32 %v321, %v324
        %vm326 = vweird.f32 %v318
        %vm327 = vweird.f32 %v321
        %vm328 = vmor %vm326, %vm327
        %v329 = vsel %vm328, %v321, %v325
        %v330 = vand.u32 2147483647, %v318
        %vm331 = vcmp.eq.f32.partialorder %v330, 8.507059e+37
        %v332 = vand.u32 %v318, 2147483648
        %v333 = vor.u32 1.1754944e-38, %v332
        %v334 = vsel %vm331, %v333, %v329
        %v335 = vmul.f32 %v319, %v334
        %v336 = vlog2.pop %v335
        %v337 = vmul.f32 %v336, 0.6931472
        %v338 = vadd.f32 %v318, 0.0
        %v339 = vadd.f32 %v338, 0.0
        %v340 = vadd.f32 %v319, 0.0
        %v341 = vadd.f32 %v340, 0.0
        %v342 = vadd.f32 %v320, 0.0
        %v343 = vadd.f32 %v342, 0.0
        %v344 = vmul.f32 %v318, %v318
        %v345 = vadd.f32 %v344, 0.0
        %v346 = vadd.f32 %v345, 0.0
        %v347 = vmul.f32 %v319, %v319
        %v348 = vadd.f32 %v347, 0.0
        %v349 = vadd.f32 %v348, 0.0
        %v350 = vmul.f32 %v318, %v319
        %v351 = vadd.f32 %v350, 0.0
        %v352 = vadd.f32 %v351, 0.0
        %v353 = vmul.f32 %v318, %v320
        %v354 = vadd.f32 %v353, 0.0
        %v355 = vadd.f32 %v354, 0.0
        %v356 = vmul.f32 %v319, %v337
        %v357 = vadd.f32 %v356, 0.0
        %v358 = vadd.f32 %v357, 0.0
        %v359 = vmul.f32 %v318, %v337
        %v360 = vadd.f32 %v359, 0.0
        %v361 = vadd.f32 %v360, 0.0
        %v362 = vld [vmem:[%s301] sm:$0xff]
        %v363 = vadd.f32 %v362, %v339
        %364 = vst [vmem:[%s301] sm:$0xff] %v363
        %v365 = vld [vmem:[%s301 + $0x8] sm:$0xff]
        %v366 = vadd.f32 %v365, %v341
        %367 = vst [vmem:[%s301 + $0x8] sm:$0xff] %v366
        %v368 = vld [vmem:[%s301 + $0x10] sm:$0xff]
        %v369 = vadd.f32 %v368, %v343
        %370 = vst [vmem:[%s301 + $0x10] sm:$0xff] %v369
        %v371 = vld [vmem:[%s301 + $0x18] sm:$0xff]
        %v372 = vadd.f32 %v371, %v346
        %373 = vst [vmem:[%s301 + $0x18] sm:$0xff] %v372
        %v374 = vld [vmem:[%s301 + $0x20] sm:$0xff]
        %v375 = vadd.f32 %v374, %v349
        %376 = vst [vmem:[%s301 + $0x20] sm:$0xff] %v375
        %v377 = vld [vmem:[%s301 + $0x28] sm:$0xff]
        %v378 = vadd.f32 %v377, %v352
        %379 = vst [vmem:[%s301 + $0x28] sm:$0xff] %v378
        %v380 = vld [vmem:[%s301 + $0x30] sm:$0xff]
        %v381 = vadd.f32 %v380, %v355
        %382 = vst [vmem:[%s301 + $0x30] sm:$0xff] %v381
        %v383 = vld [vmem:[%s301 + $0x38] sm:$0xff]
        %v384 = vadd.f32 %v383, %v358
        %385 = vst [vmem:[%s301 + $0x38] sm:$0xff] %v384
        %v386 = vld [vmem:[%s301 + $0x40] sm:$0xff]
        %v387 = vadd.f32 %v386, %v361
        %388 = vst [vmem:[%s301 + $0x40] sm:$0xff] %v387
        %s389 = sand.u32 %s142, 1
        %s390 = scalar_lea.sflag [#allocation4], %s389
        %s391 = sand.u32 %s142, 1
        %s392 = smul.addr %s391, 72
        %s393 = scalar_lea.vmem [#allocation8], %s392
        // Predicated region
        $region49: #{tpu_custom_call.1} parent=31 // pred_check
          %p394 = pneg %p152
        $region50: #{tpu_custom_call.1} parent=31 // pred_check_branch
          %396 = sbr.rel (%p394) target = $region52
        $region51: #{tpu_custom_call.1} parent=31 // pred_region
          %398 = vsyncadd %s390, 0
          %s399 = smul.addr %s29, 9
          %s400 = smul.addr %s28, 9
          %s401 = sadd.s32 %s399, %s400
          %s402 = smul.addr %s401, 8
          %s403 = scalar_lea.hbm %s3, %s402
          %s404 = sshll.u32 %s393, 4
          %s405 = int_to_ptr.vmem [resolvable:$true] %s404
          %s406 = sshll.u32 %s403, 4
          %s407 = int_to_ptr.hbm [resolvable:$true] %s406
          %412 = dma.vmem_to_hbm [thread:$0]  %s405, 1152, %s407, %s390, 128, 128, 8
        $region52: #{tpu_custom_call.1} parent=31 // pred_fallthru
          _
      $region32: #{tpu_custom_call.1} parent=5 // pred_fallthru
        _
      %p413 = scmp.le.s32.totalorder 2, %s18
      // Predicated region
      $region53: #{tpu_custom_call.1} parent=5 // pred_check
        %p414 = pneg %p413
      $region54: #{tpu_custom_call.1} parent=5 // pred_check_branch
        %416 = sbr.rel (%p414) target = $region56
      $region55: #{tpu_custom_call.1} parent=5 // pred_region
        %s417 = ssub.s32 %s18, 2
        // Predicated region
        $region57: #{tpu_custom_call.1} parent=55 // pred_check
          %p418 = pneg %p158
        $region58: #{tpu_custom_call.1} parent=55 // pred_check_branch
          %420 = sbr.rel (%p418) target = $region60
        $region59: #{tpu_custom_call.1} parent=55 // pred_region
          %s421 = sand.u32 %s143, 1
          %s422 = scalar_lea.sflag [#allocation4], %s421
          %s423 = sand.u32 %s143, 1
          %s424 = smul.addr %s423, 72
          %s425 = scalar_lea.vmem [#allocation8], %s424
          %427 = dma.done %s422, 1152
        $region60: #{tpu_custom_call.1} parent=55 // pred_fallthru
          _
      $region56: #{tpu_custom_call.1} parent=5 // pred_fallthru
        _
    $region6: #{tpu_custom_call.1} parent=1 // loop_footer
      %s22 = sadd.s32 1, %s18
    $region7: #{tpu_custom_call.1} parent=1 // loop_footer_branch
      %17 = sbr.rel target = $region3
    $region8: #{tpu_custom_call.1} parent=1 // loop_exit
      _
    %428 = vsyncpa [#allocation3], 1
    %s429 = scalar_lea.sflag [#allocation3], 1
    %430 = vsyncpa %s429, 1
    %431 = vsyncpa [#allocation6], 1
    %s432 = scalar_lea.sflag [#allocation6], 1
    %433 = vsyncpa %s432, 1
    %434 = vsyncpa [#allocation4], 1
    %s435 = scalar_lea.sflag [#allocation4], 1
    %436 = vsyncpa %s435, 1

</llo_original>
